<compile_context>
chip_gen: v6e
topology: v6e:2x2x1
jax: 0.10.0
libtpu: 0.0.40
codegen_flags: <defaults>
</compile_context>

<pallas_src>
import jax
import jax.numpy as jnp
import numpy as np
from jax import lax
from jax.experimental import pallas as pl
from jax.experimental.pallas import tpu as pltpu


# ----------------------------- tiling / vmem helpers ------------------------------
def _pick_tile(n, target):
    """Largest divisor of n that is <= target (prefer 128-multiples, then 8)."""
    if n <= target:
        return n
    for step in (128, 8, 1):
        t = (target // step) * step
        while t >= step:
            if n % t == 0:
                return t
            t -= step
    return n


def _vmem_limit(nbytes, hi_mib=64):
    """Explicit scoped-VMEM limit: 2x headroom, clamped to [8 MiB, hi] (v7x phys = 64 MiB)."""
    return int(min(max(2 * nbytes + (2 << 20), 8 << 20), hi_mib << 20))


# ----------------------------- kernel 1: BN0 + g_func ------------------------------
def bn0_gfunc_kernel(feat_ref, xyz_ref, s0_ref, t0_ref, wgf_ref, wgx_ref,
                     fbn_ref, f0t_ref):
    # blocks: feat (1, F, TN), xyz (1, 3, TN); s0/t0 (F, 1) f32; weights bf16.
    fbn = feat_ref[0] * s0_ref[...] + t0_ref[...]          # folded BN0, f32 elementwise
    fbn_ref[0] = fbn
    # g_func split: wg^T @ concat(fbn, xyz) == wgf^T @ fbn + wgx^T @ xyz  (bf16 MXU).
    f0t_ref[0] = (
        jnp.dot(wgf_ref[...], fbn.astype(jnp.bfloat16),
                preferred_element_type=jnp.float32)
        + jnp.dot(wgx_ref[...], xyz_ref[0].astype(jnp.bfloat16),
                  preferred_element_type=jnp.float32))


# ----------------- kernel 2: kNN + 3 neighbour-max hops + fused h_func -------------
def make_knn_hops_kernel(k, n, f0_dim, tq, sb):
    """One batch element per grid step; in-kernel loop over output-row tiles of TQ
    points.  Only thr [N,1] and per-hop features [F0, N] are resident; the pdist
    row tile is recomputed per hop/tile (K=3 matmul)."""
    NEG = -1e30          # python literals -> lowered as constants (not captured tracers)
    BIG = 1e30
    n_tiles = n // tq
    n_src = n // sb

    def kernel(xyz_n3_ref, xyz_t_ref, f0t_ref, wh1_ref, wh2_ref, wh3_ref,
               ht_ref, thr_ref, f1t_ref, f2t_ref):

        def row_tile(t):
            q0 = pl.multiple_of(t * tq, tq)
            xq = xyz_n3_ref[0, pl.ds(q0, tq), :]                         # [TQ, 3]
            xx_q = jnp.sum(xq * xq, axis=-1, keepdims=True)              # [TQ, 1]
            return q0, xq, xx_q

        def neigh_max(xq, xx_q, thr, load_src):
            # Masked max over source points; reduce axis (N_src) is lane-dense.
            def body(j, acc):
                s = pl.multiple_of(j * sb, sb)
                xs = xyz_t_ref[0, :, pl.ds(s, sb)]                       # [3, SB]
                pd = (xx_q
                      - 2.0 * jnp.dot(xq, xs, preferred_element_type=jnp.float32)
                      + jnp.sum(xs * xs, axis=0, keepdims=True))         # [TQ, SB] f32
                m = pd <= thr                                            # [TQ, SB]
                fb = load_src(s)                                         # [F0, SB]
                vals = jnp.where(m[None, :, :], fb[:, None, :], NEG)     # [F0, TQ, SB]
                return jnp.maximum(acc, jnp.max(vals, axis=-1))
            acc0 = jnp.full((f0_dim, tq), NEG, dtype=jnp.float32)
            return lax.fori_loop(0, n_src, body, acc0,
                                 unroll=2 if n_src > 1 else 1)

        # ---- pass 0: per-row k-th smallest distance threshold ---------------------
        @pl.loop(0, n_tiles)
        def _(t):
            q0, xq, xx_q = row_tile(t)
            xt = xyz_t_ref[0]                                            # [3, N]
            pd = (xx_q
                  - 2.0 * jnp.dot(xq, xt, preferred_element_type=jnp.float32)
                  + jnp.sum(xt * xt, axis=0, keepdims=True))             # [TQ, N]
            thr = jnp.min(pd, axis=-1, keepdims=True)
            for _ in range(k - 1):       # short static loop; overwrites pd in place
                pd = jnp.where(pd <= thr, BIG, pd)
                thr = jnp.min(pd, axis=-1, keepdims=True)
            # kNN set == {j : dist <= thr}.  NOTE: under exact distance ties this
            # can select more than k points (differs from torch.topk on tied data).
            thr_ref[pl.ds(q0, tq), :] = thr

        # ---- hop 1: max of feat0 over the kNN set ---------------------------------
        @pl.loop(0, n_tiles)
        def _(t):
            q0, xq, xx_q = row_tile(t)
            thr = thr_ref[pl.ds(q0, tq), :]
            f1t_ref[:, pl.ds(q0, tq)] = neigh_max(
                xq, xx_q, thr, lambda s: f0t_ref[0, :, pl.ds(s, sb)])

        # ---- hop 2 ----------------------------------------------------------------
        @pl.loop(0, n_tiles)
        def _(t):
            q0, xq, xx_q = row_tile(t)
            thr = thr_ref[pl.ds(q0, tq), :]
            f2t_ref[:, pl.ds(q0, tq)] = neigh_max(
                xq, xx_q, thr, lambda s: f1t_ref[:, pl.ds(s, sb)])

        # ---- hop 3 + fused h_func matmul ------------------------------------------
        @pl.loop(0, n_tiles)
        def _(t):
            q0, xq, xx_q = row_tile(t)
            thr = thr_ref[pl.ds(q0, tq), :]
            f3 = neigh_max(xq, xx_q, thr, lambda s: f2t_ref[:, pl.ds(s, sb)])
            f0 = f0t_ref[0, :, pl.ds(q0, tq)]                            # [F0, TQ]
            d1 = (f1t_ref[:, pl.ds(q0, tq)] - f0).astype(jnp.bfloat16)
            d2 = (f2t_ref[:, pl.ds(q0, tq)] - f0).astype(jnp.bfloat16)
            d3 = (f3 - f0).astype(jnp.bfloat16)
            ht_ref[0, :, pl.ds(q0, tq)] = (
                jnp.dot(wh1_ref[...], d1, preferred_element_type=jnp.float32)
                + jnp.dot(wh2_ref[...], d2, preferred_element_type=jnp.float32)
                + jnp.dot(wh3_ref[...], d3, preferred_element_type=jnp.float32))

    return kernel


# --------------------------- kernel 3: BN2 + residual ------------------------------
def bn2_residual_kernel(h_ref, fbn_ref, s2_ref, t2_ref, out_ref):
    out_ref[0] = h_ref[0] * s2_ref[...] + t2_ref[...] + fbn_ref[0]


# ------------------------------------ wrapper --------------------------------------
def surface_conv_forward(xyz, feat, params, k, *,
                         col_tile=512, q_tile=128, src_block=256):
    """xyz: [B, 3, N], feat: [B, F, N] (PyTorch layout). Returns [B, F, N], f32."""
    B, _, N = xyz.shape
    F = feat.shape[1]
    F0 = params["wg"].shape[1]
    eps = 1e-5
    assert 1 <= k <= N

    xyz = xyz.astype(jnp.float32)
    feat = feat.astype(jnp.float32)
    xyz_n3 = jnp.transpose(xyz, (0, 2, 1))            # [B, N, 3]  (only, tiny, transpose)

    # TODO(synk): N not divisible by the target tiles falls back to smaller divisors;
    # true ragged N would need padded blocks.
    TN = _pick_tile(N, col_tile)                      # phase-1/3 lane tile
    TQ = _pick_tile(N, q_tile)                        # phase-2 output-row tile
    SB = _pick_tile(N, src_block)                     # phase-2 source-block tile
    n_col = N // TN

    # Weights pre-transposed and cast to bf16 for the MXU (f32 accumulation).
    wg = params["wg"].astype(jnp.float32)             # [F+3, F0]
    wgfT = jnp.transpose(wg[:F]).astype(jnp.bfloat16)          # [F0, F]
    wgxT = jnp.transpose(wg[F:]).astype(jnp.bfloat16)          # [F0, 3]
    wh = params["wh"].astype(jnp.float32)              # [3*F0, F]
    whT = [jnp.transpose(wh[i * F0:(i + 1) * F0]).astype(jnp.bfloat16) for i in range(3)]

    # BN0 statistics: tiny per-feature two-pass reduction -> plain XLA (review OK).
    g0 = params["g0"].reshape(F).astype(jnp.float32)
    b0 = params["b0"].reshape(F).astype(jnp.float32)
    mean0 = jnp.mean(feat, axis=(0, 2))
    var0 = jnp.mean(jnp.square(feat - mean0[None, :, None]), axis=(0, 2))
    s0v = g0 * lax.rsqrt(var0 + eps)
    s0 = s0v.reshape(F, 1)
    t0 = (b0 - mean0 * s0v).reshape(F, 1)

    par2 = ("parallel", "parallel")

    # --- phase 1: BN0 (folded) + g_func, tiled over (batch, N columns) -------------
    est1 = 4 * TN * (2 * F + F0 + 3) * 4 + (F + 3) * F0 * 2 + 4 * F * 4
    fbn, f0t = pl.pallas_call(
        bn0_gfunc_kernel,
        out_shape=(jax.ShapeDtypeStruct((B, F, N), jnp.float32),
                   jax.ShapeDtypeStruct((B, F0, N), jnp.float32)),
        grid=(B, n_col),
        in_specs=[pl.BlockSpec((1, F, TN), lambda b, t: (b, 0, t)),
                  pl.BlockSpec((1, 3, TN), lambda b, t: (b, 0, t)),
                  pl.BlockSpec((F, 1), lambda b, t: (0, 0)),
                  pl.BlockSpec((F, 1), lambda b, t: (0, 0)),
                  pl.BlockSpec((F0, F), lambda b, t: (0, 0)),
                  pl.BlockSpec((F0, 3), lambda b, t: (0, 0))],
        out_specs=(pl.BlockSpec((1, F, TN), lambda b, t: (b, 0, t)),
                   pl.BlockSpec((1, F0, TN), lambda b, t: (b, 0, t))),
        compiler_params=pltpu.CompilerParams(
            dimension_semantics=par2, vmem_limit_bytes=_vmem_limit(est1)),
    )(feat, xyz, s0, t0, wgfT, wgxT)

    # --- phase 2: kNN + 3 neighbour-max hops + fused h_func, grid over B -----------
    # Hop j needs hop j-1 features at ALL source points, so the output-row tile loop
    # lives inside the kernel; only the batch axis is gridded ("parallel").
    est2 = (2 * (2 * 3 * N + F0 * N + F * N) * 4       # in/out blocks (double-buffered)
            + 3 * F * F0 * 2                           # wh blocks (bf16)
            + (128 + 2 * F0) * N * 4                   # thr (lane-padded) + f1t + f2t
            + 2 * TQ * N * 4                           # pdist temp (threshold pass)
            + (F0 + 3) * TQ * SB * 4)                  # vals + per-block temps
    knn_kernel = make_knn_hops_kernel(k, N, F0, TQ, SB)
    h = pl.pallas_call(
        knn_kernel,
        out_shape=jax.ShapeDtypeStruct((B, F, N), jnp.float32),
        grid=(B,),
        in_specs=[pl.BlockSpec((1, N, 3), lambda b: (b, 0, 0)),
                  pl.BlockSpec((1, 3, N), lambda b: (b, 0, 0)),
                  pl.BlockSpec((1, F0, N), lambda b: (b, 0, 0)),
                  pl.BlockSpec((F, F0), lambda b: (0, 0)),
                  pl.BlockSpec((F, F0), lambda b: (0, 0)),
                  pl.BlockSpec((F, F0), lambda b: (0, 0))],
        out_specs=pl.BlockSpec((1, F, N), lambda b: (b, 0, 0)),
        scratch_shapes=[pltpu.VMEM((N, 1), jnp.float32),       # k-th distance per row
                        pltpu.VMEM((F0, N), jnp.float32),      # feat1 (transposed)
                        pltpu.VMEM((F0, N), jnp.float32)],     # feat2 (transposed)
        compiler_params=pltpu.CompilerParams(
            dimension_semantics=("parallel",),
            vmem_limit_bytes=_vmem_limit(est2)),
    )(xyz_n3, xyz, f0t, whT[0], whT[1], whT[2])

    # BN2 statistics (two-pass, plain XLA).
    g2 = params["g2"].reshape(F).astype(jnp.float32)
    b2 = params["b2"].reshape(F).astype(jnp.float32)
    mean2 = jnp.mean(h, axis=(0, 2))
    var2 = jnp.mean(jnp.square(h - mean2[None, :, None]), axis=(0, 2))
    s2v = g2 * lax.rsqrt(var2 + eps)
    s2 = s2v.reshape(F, 1)
    t2 = (b2 - mean2 * s2v).reshape(F, 1)

    # --- phase 3: BN2 (folded) + residual, tiled over (batch, N columns) -----------
    est3 = 2 * 3 * F * TN * 4 + 4 * F * 4
    out = pl.pallas_call(
        bn2_residual_kernel,
        out_shape=jax.ShapeDtypeStruct((B, F, N), jnp.float32),
        grid=(B, n_col),
        in_specs=[pl.BlockSpec((1, F, TN), lambda b, t: (b, 0, t)),
                  pl.BlockSpec((1, F, TN), lambda b, t: (b, 0, t)),
                  pl.BlockSpec((F, 1), lambda b, t: (0, 0)),
                  pl.BlockSpec((F, 1), lambda b, t: (0, 0))],
        out_specs=pl.BlockSpec((1, F, TN), lambda b, t: (b, 0, t)),
        compiler_params=pltpu.CompilerParams(
            dimension_semantics=par2, vmem_limit_bytes=_vmem_limit(est3)),
    )(h, fbn, s2, t2)
    return out


# ------------------------------- pure-JAX reference --------------------------------
def surface_conv_ref(xyz_t, feat_t, params, k):
    """Reference using top_k + gather, in (B, N, C) layout."""
    eps = 1e-5
    hp = jax.lax.Precision.HIGHEST
    mean0 = jnp.mean(feat_t, axis=(0, 1), keepdims=True)
    var0 = jnp.mean((feat_t - mean0) ** 2, axis=(0, 1), keepdims=True)
    fbn = (feat_t - mean0) / jnp.sqrt(var0 + eps) * params["g0"] + params["b0"]

    cat = jnp.concatenate([fbn, xyz_t], axis=-1)
    feat0 = jnp.einsum("bnc,cf->bnf", cat, params["wg"], precision=hp)

    xx = jnp.sum(xyz_t * xyz_t, axis=-1, keepdims=True)
    inner = jnp.einsum("bnc,bmc->bnm", xyz_t, xyz_t, precision=hp)
    pdist = xx - 2.0 * inner + jnp.swapaxes(xx, 1, 2)
    _, idx = jax.lax.top_k(-pdist, k)                              # [B, N, k]

    def gather_max(f):
        g = jax.vmap(lambda fb, ib: fb[ib])(f, idx)                # [B, N, k, Fc]
        return jnp.max(g, axis=2)

    feat1 = gather_max(feat0)
    feat2 = gather_max(feat1)
    feat3 = gather_max(feat2)
    rel = jnp.concatenate([feat1 - feat0, feat2 - feat0, feat3 - feat0], axis=-1)
    h = jnp.einsum("bnc,cf->bnf", rel, params["wh"], precision=hp)
    mean2 = jnp.mean(h, axis=(0, 1), keepdims=True)
    var2 = jnp.mean((h - mean2) ** 2, axis=(0, 1), keepdims=True)
    out = (h - mean2) / jnp.sqrt(var2 + eps) * params["g2"] + params["b2"] + fbn
    return out                                                     # [B, N, F]


if __name__ == "__main__":
    # Module config: SurfaceConv(n_points=N, k_value=8, n_feat=32)
    B, N, F, K = 2, 64, 32, 8
    F0 = int(0.5 * F)                                              # g_func output width

    key = jax.random.PRNGKey(0)
    k_xyz, k_feat, k_wg, k_wh = jax.random.split(key, 4)
    xyz = jax.random.normal(k_xyz, (B, 3, N), dtype=jnp.float32)
    feat = jax.random.normal(k_feat, (B, F, N), dtype=jnp.float32)

    params = {
        # nn.Linear stores weight [out, in]; we keep W^T so x @ W^T applies.
        "wg": (0.1 * jax.random.normal(k_wg, (F + 3, F0))).astype(jnp.float32),
        "wh": (0.1 * jax.random.normal(k_wh, (3 * F0, F))).astype(jnp.float32),
        # BatchNorm affine params at default init (gamma=1, beta=0).
        "g0": jnp.ones((1, F), jnp.float32),
        "b0": jnp.zeros((1, F), jnp.float32),
        "g2": jnp.ones((1, F), jnp.float32),
        "b2": jnp.zeros((1, F), jnp.float32),
    }

    out = surface_conv_forward(xyz, feat, params, K)
    out = jax.block_until_ready(out)
    assert out.shape == (B, F, N)

    # Cross-check against an independent pure-JAX reference (kernel matmuls use bf16
    # operands with f32 accumulation -> slightly loosened tolerance).
    ref = surface_conv_ref(jnp.transpose(xyz, (0, 2, 1)),
                           jnp.transpose(feat, (0, 2, 1)), params, K)
    ref = jnp.transpose(ref, (0, 2, 1))
    np.testing.assert_allclose(np.asarray(out), np.asarray(ref),
                               rtol=3e-2, atol=3e-2)

    print("KERNEL_OK")
</pallas_src>

<mosaic_0001>
module attributes {stable_mosaic.version = 11 : i64} {
  func.func @bn0_gfunc_kernel(%arg0: i32, %arg1: i32, %arg2: memref<1x32x64xf32, #tpu.memory_space<vmem>>, %arg3: memref<1x3x64xf32, #tpu.memory_space<vmem>>, %arg4: memref<32x1xf32, #tpu.memory_space<vmem>>, %arg5: memref<32x1xf32, #tpu.memory_space<vmem>>, %arg6: memref<16x32xbf16, #tpu.memory_space<vmem>>, %arg7: memref<16x3xbf16, #tpu.memory_space<vmem>>, %arg8: memref<1x32x64xf32, #tpu.memory_space<vmem>>, %arg9: memref<1x16x64xf32, #tpu.memory_space<vmem>>) attributes {dimension_semantics = [#tpu.dimension_semantics<parallel>, #tpu.dimension_semantics<parallel>], iteration_bounds = array<i64: 2, 1>, scalar_prefetch = 0 : i64, scratch_operands = 0 : i64, tpu.core_type = #tpu.core_type<tc>, window_params = [{transform_indices = @transform_0, window_bounds = array<i64: 1, 32, 64>}, {transform_indices = @transform_1, window_bounds = array<i64: 1, 3, 64>}, {pipeline_mode = #tpu.pipeline_mode<synchronous>, transform_indices = @transform_2, window_bounds = array<i64: 32, 1>}, {pipeline_mode = #tpu.pipeline_mode<synchronous>, transform_indices = @transform_3, window_bounds = array<i64: 32, 1>}, {pipeline_mode = #tpu.pipeline_mode<synchronous>, transform_indices = @transform_4, window_bounds = array<i64: 16, 32>}, {pipeline_mode = #tpu.pipeline_mode<synchronous>, transform_indices = @transform_5, window_bounds = array<i64: 16, 3>}, {transform_indices = @transform_6, window_bounds = array<i64: 1, 32, 64>}, {transform_indices = @transform_7, window_bounds = array<i64: 1, 16, 64>}]} {
    %c0 = arith.constant 0 : index
    %c0_0 = arith.constant 0 : index
    %c0_1 = arith.constant 0 : index
    %0 = vector.load %arg2[%c0, %c0_0, %c0_1] : memref<1x32x64xf32, #tpu.memory_space<vmem>>, vector<1x32x64xf32>
    %1 = vector.shape_cast %0 : vector<1x32x64xf32> to vector<32x64xf32>
    %c0_2 = arith.constant 0 : index
    %c0_3 = arith.constant 0 : index
    %2 = vector.load %arg4[%c0_2, %c0_3] : memref<32x1xf32, #tpu.memory_space<vmem>>, vector<32x1xf32>
    %3 = vector.broadcast %2 : vector<32x1xf32> to vector<32x64xf32>
    %4 = arith.mulf %1, %3 : vector<32x64xf32>
    %c0_4 = arith.constant 0 : index
    %c0_5 = arith.constant 0 : index
    %5 = vector.load %arg5[%c0_4, %c0_5] : memref<32x1xf32, #tpu.memory_space<vmem>>, vector<32x1xf32>
    %6 = vector.broadcast %5 : vector<32x1xf32> to vector<32x64xf32>
    %7 = arith.addf %4, %6 : vector<32x64xf32>
    %c0_6 = arith.constant 0 : index
    %c0_7 = arith.constant 0 : index
    %c0_8 = arith.constant 0 : index
    %8 = vector.load %arg8[%c0_6, %c0_7, %c0_8] : memref<1x32x64xf32, #tpu.memory_space<vmem>>, vector<1x32x64xf32>
    %9 = vector.shape_cast %8 : vector<1x32x64xf32> to vector<32x64xf32>
    %10 = vector.shape_cast %7 : vector<32x64xf32> to vector<1x32x64xf32>
    tpu.vector_store %arg8[%c0_6, %c0_7, %c0_8], %10 {strides = array<i32>} : memref<1x32x64xf32, #tpu.memory_space<vmem>>, vector<1x32x64xf32>,
    %c0_9 = arith.constant 0 : index
    %c0_10 = arith.constant 0 : index
    %11 = vector.load %arg6[%c0_9, %c0_10] : memref<16x32xbf16, #tpu.memory_space<vmem>>, vector<16x32xbf16>
    %12 = arith.truncf %7 : vector<32x64xf32> to vector<32x64xbf16>
    %cst = arith.constant dense<0.000000e+00> : vector<16x64xf32>
    %13 = tpu.matmul %11, %12, %cst {dimension_numbers = #tpu.dot_dimension_numbers<[1], [0], [0], [1], [0, 0, 1, 1], [], []>} : vector<16x32xbf16>, vector<32x64xbf16>, vector<16x64xf32> -> vector<16x64xf32>
    %c0_11 = arith.constant 0 : index
    %c0_12 = arith.constant 0 : index
    %14 = vector.load %arg7[%c0_11, %c0_12] : memref<16x3xbf16, #tpu.memory_space<vmem>>, vector<16x3xbf16>
    %c0_13 = arith.constant 0 : index
    %c0_14 = arith.constant 0 : index
    %c0_15 = arith.constant 0 : index
    %15 = vector.load %arg3[%c0_13, %c0_14, %c0_15] : memref<1x3x64xf32, #tpu.memory_space<vmem>>, vector<1x3x64xf32>
    %16 = vector.shape_cast %15 : vector<1x3x64xf32> to vector<3x64xf32>
    %17 = arith.truncf %16 : vector<3x64xf32> to vector<3x64xbf16>
    %cst_16 = arith.constant dense<0.000000e+00> : vector<16x64xf32>
    %18 = tpu.matmul %14, %17, %cst_16 {dimension_numbers = #tpu.dot_dimension_numbers<[1], [0], [0], [1], [0, 0, 1, 1], [], []>} : vector<16x3xbf16>, vector<3x64xbf16>, vector<16x64xf32> -> vector<16x64xf32>
    %19 = arith.addf %13, %18 : vector<16x64xf32>
    %c0_17 = arith.constant 0 : index
    %c0_18 = arith.constant 0 : index
    %c0_19 = arith.constant 0 : index
    %20 = vector.load %arg9[%c0_17, %c0_18, %c0_19] : memref<1x16x64xf32, #tpu.memory_space<vmem>>, vector<1x16x64xf32>
    %21 = vector.shape_cast %20 : vector<1x16x64xf32> to vector<16x64xf32>
    %22 = vector.shape_cast %19 : vector<16x64xf32> to vector<1x16x64xf32>
    tpu.vector_store %arg9[%c0_17, %c0_18, %c0_19], %22 {strides = array<i32>} : memref<1x16x64xf32, #tpu.memory_space<vmem>>, vector<1x16x64xf32>,
    return
  }
  func.func @transform_0(%arg0: i32, %arg1: i32) -> (i32, i32, i32) {
    %c0_i32 = arith.constant 0 : i32
    %c0_i32_0 = arith.constant 0 : i32
    return %arg0, %c0_i32, %arg1 : i32, i32, i32
  }
  func.func @transform_1(%arg0: i32, %arg1: i32) -> (i32, i32, i32) {
    %c0_i32 = arith.constant 0 : i32
    %c0_i32_0 = arith.constant 0 : i32
    return %arg0, %c0_i32, %arg1 : i32, i32, i32
  }
  func.func @transform_2(%arg0: i32, %arg1: i32) -> (i32, i32) {
    %c0_i32 = arith.constant 0 : i32
    %c0_i32_0 = arith.constant 0 : i32
    %c0_i32_1 = arith.constant 0 : i32
    return %c0_i32, %c0_i32_0 : i32, i32
  }
  func.func @transform_3(%arg0: i32, %arg1: i32) -> (i32, i32) {
    %c0_i32 = arith.constant 0 : i32
    %c0_i32_0 = arith.constant 0 : i32
    %c0_i32_1 = arith.constant 0 : i32
    return %c0_i32, %c0_i32_0 : i32, i32
  }
  func.func @transform_4(%arg0: i32, %arg1: i32) -> (i32, i32) {
    %c0_i32 = arith.constant 0 : i32
    %c0_i32_0 = arith.constant 0 : i32
    %c0_i32_1 = arith.constant 0 : i32
    return %c0_i32, %c0_i32_0 : i32, i32
  }
  func.func @transform_5(%arg0: i32, %arg1: i32) -> (i32, i32) {
    %c0_i32 = arith.constant 0 : i32
    %c0_i32_0 = arith.constant 0 : i32
    %c0_i32_1 = arith.constant 0 : i32
    return %c0_i32, %c0_i32_0 : i32, i32
  }
  func.func @transform_6(%arg0: i32, %arg1: i32) -> (i32, i32, i32) {
    %c0_i32 = arith.constant 0 : i32
    %c0_i32_0 = arith.constant 0 : i32
    return %arg0, %c0_i32, %arg1 : i32, i32, i32
  }
  func.func @transform_7(%arg0: i32, %arg1: i32) -> (i32, i32, i32) {
    %c0_i32 = arith.constant 0 : i32
    %c0_i32_0 = arith.constant 0 : i32
    return %arg0, %c0_i32, %arg1 : i32, i32, i32
  }
}

</mosaic_0001>

<llo_original>
// kernel: tpu_custom_call.1
$region0: #{tpu_custom_call.1}
  #allocation0 [shape = 'u32[]', space=smem, size = 0x4, offset = 0x4, fixed_abs, tag = 'smem constant byte address 0x4 - core index']
  #allocation1 [shape = 'u32[144,128]{1,0:T(1,128)}', space=vmem, size = 0x12000, scoped, tag = 'internal scratch']
  %s0 = inlined_call_operand.vmem [shape: f32[2,32,64], index: 0, kind: input, shape index: {}]
  %s1 = inlined_call_operand.vmem [shape: f32[2,3,64], index: 1, kind: input, shape index: {}]
  %s2 = inlined_call_operand.vmem [shape: f32[32,1], index: 2, kind: input, shape index: {}]
  %s3 = inlined_call_operand.vmem [shape: f32[32,1], index: 3, kind: input, shape index: {}]
  %s4 = inlined_call_operand.vmem [shape: bf16[16,32], index: 4, kind: input, shape index: {}]
  %s5 = inlined_call_operand.vmem [shape: bf16[16,3], index: 5, kind: input, shape index: {}]
  %s6 = inlined_call_operand.hbm [shape: f32[2,32,64], index: 6, kind: output, shape index: {0}]
  %s7 = inlined_call_operand.hbm [shape: f32[2,16,64], index: 7, kind: output, shape index: {1}]
  %8 = xla_tuple %s6, %s7
  %s9 = sld [smem:[#allocation0]]
  $region65: #{tpu_custom_call.1} parent=0
    _
  %s11 = ssub.s32 1, %s9
  %s12 = scalar_select 0, %s11, %s9
  $region1: #{tpu_custom_call.1} parent=0
    #allocation2 [shape = 'u8[32768]{0}', space=vmem, size = 0x8000, scoped, tag = 'output window, operand 0']
    #allocation3 [shape = 's32[2]{0}', space=sflag, size = 0x8, scoped, tag = 'scoped memory for tpu_custom_call.1']
    #allocation4 [shape = 'u8[16384]{0}', space=vmem, size = 0x4000, scoped, tag = 'output window, operand 1']
    #allocation5 [shape = 's32[2]{0}', space=sflag, size = 0x8, scoped, tag = 'scoped memory for tpu_custom_call.1']
    %13 = vsyncpa [#allocation3], 0
    %s14 = scalar_lea.sflag [#allocation3], 1
    %15 = vsyncpa %s14, 0
    %16 = vsyncpa [#allocation5], 0
    %s17 = scalar_lea.sflag [#allocation5], 1
    %18 = vsyncpa %s17, 0
    loop: start=0, step=1, limit=4
    $region2: #{tpu_custom_call.1} parent=1 // loop_pre_header
      _
    $region3: #{tpu_custom_call.1} parent=1 // loop_header
      %s20 = sphi 0, %s24
      %p21 = scmp.ge.s32.totalorder %s20, 4
      %s27 = sphi 0, %s39
      %s28 = sphi 0, %s35
      %s29 = sphi 0, %s27
      %s30 = sphi 0, %s28
      %s31 = sphi 0, %s29
      %s32 = sphi 0, %s30
      %s44 = sphi 0, %s46
      %s47 = sphi 0, %s44
      %s48 = sphi 0, %s47
      %s64 = sphi 0, %s48
      %s72 = sphi 0, %s74
      %s75 = sphi 0, %s72
      %s76 = sphi 0, %s75
      %s92 = sphi 0, %s76
      %s96 = sphi 0, %s96
      %s98 = sphi 0, %s96
      %s99 = sphi 0, %s98
      %s113 = sphi 0, %s99
      %s117 = sphi 0, %s117
      %s119 = sphi 0, %s117
      %s120 = sphi 0, %s119
      %s134 = sphi 0, %s120
      %s138 = sphi 0, %s138
      %s140 = sphi 0, %s138
      %s141 = sphi 0, %s140
      %s155 = sphi 0, %s141
      %s159 = sphi 0, %s159
      %s161 = sphi 0, %s159
      %s162 = sphi 0, %s161
      %s176 = sphi 0, %s162
      %s184 = sphi 0, %s186
      %s187 = sphi 0, %s184
      %s188 = sphi 0, %s187
      %s204 = sphi 0, %s188
      %s212 = sphi 0, %s214
      %s215 = sphi 0, %s212
      %s216 = sphi 0, %s215
      %s232 = sphi 0, %s216
    $region4: #{tpu_custom_call.1} parent=1 // loop_header_branch
      %23 = sbr.rel (%p21) target = $region8
    $region5: #{tpu_custom_call.1} parent=1 // loop_body
      %s25 = ssub.s32 %s20, 1
      %s26 = ssub.s32 %s20, 2
      %s33 = sadd.s32 1, %s28
      %p34 = scmp.ge.s32.totalorder %s33, 1
      %s35 = scalar_select %p34, 0, %s33
      %s36 = sadd.s32 1, %s27
      %s37 = scalar_select %p34, %s36, %s27
      %p38 = scmp.ge.s32.totalorder %s37, 2
      %s39 = scalar_select %p38, 0, %s37
      %s40 = ssub.s32 %s27, %s39
      %s41 = ssub.s32 %s28, %s35
      %s42 = sor.u32 %s40, %s41
      %p43 = scmp.eq.s32.totalorder %s42, 0
      %s45 = sadd.s32 %s44, 1
      %s46 = scalar_select %p43, %s44, %s45
      %p49 = pneg %p43
      %p50 = scmp.eq.s32.totalorder %s20, 1
      %p51 = por %p49, %p50
      %p52 = scmp.ne.s32.totalorder %s44, %s47
      %p53 = scmp.eq.s32.totalorder %s20, 0
      %p54 = por %p52, %p53
      %p55 = scmp.ne.s32.totalorder %s44, %s47
      %p56 = scmp.eq.s32.totalorder %s25, 1
      %p57 = por %p55, %p56
      %p58 = scmp.ne.s32.totalorder %s47, %s48
      %p59 = scmp.eq.s32.totalorder %s25, 0
      %p60 = por %p58, %p59
      %p61 = scmp.ne.s32.totalorder %s47, %s48
      %p62 = scmp.eq.s32.totalorder %s26, 1
      %p63 = por %p61, %p62
      %p65 = scmp.ne.s32.totalorder %s48, %s64
      %p66 = scmp.eq.s32.totalorder %s26, 0
      %p67 = por %p65, %p66
      %s68 = ssub.s32 %s27, %s39
      %s69 = ssub.s32 %s28, %s35
      %s70 = sor.u32 %s68, %s69
      %p71 = scmp.eq.s32.totalorder %s70, 0
      %s73 = sadd.s32 %s72, 1
      %s74 = scalar_select %p71, %s72, %s73
      %p77 = pneg %p71
      %p78 = scmp.eq.s32.totalorder %s20, 1
      %p79 = por %p77, %p78
      %p80 = scmp.ne.s32.totalorder %s72, %s75
      %p81 = scmp.eq.s32.totalorder %s20, 0
      %p82 = por %p80, %p81
      %p83 = scmp.ne.s32.totalorder %s72, %s75
      %p84 = scmp.eq.s32.totalorder %s25, 1
      %p85 = por %p83, %p84
      %p86 = scmp.ne.s32.totalorder %s75, %s76
      %p87 = scmp.eq.s32.totalorder %s25, 0
      %p88 = por %p86, %p87
      %p89 = scmp.ne.s32.totalorder %s75, %s76
      %p90 = scmp.eq.s32.totalorder %s26, 1
      %p91 = por %p89, %p90
      %p93 = scmp.ne.s32.totalorder %s76, %s92
      %p94 = scmp.eq.s32.totalorder %s26, 0
      %p95 = por %p93, %p94
      %s97 = sadd.s32 %s96, 1
      %p100 = scmp.eq.s32.totalorder %s20, 1
      %p101 = scmp.ne.s32.totalorder %s96, %s98
      %p102 = scmp.eq.s32.totalorder %s20, 0
      %p103 = por %p101, %p102
      %p104 = scmp.ne.s32.totalorder %s96, %s98
      %p105 = scmp.eq.s32.totalorder %s25, 1
      %p106 = por %p104, %p105
      %p107 = scmp.ne.s32.totalorder %s98, %s99
      %p108 = scmp.eq.s32.totalorder %s25, 0
      %p109 = por %p107, %p108
      %p110 = scmp.ne.s32.totalorder %s98, %s99
      %p111 = scmp.eq.s32.totalorder %s26, 1
      %p112 = por %p110, %p111
      %p114 = scmp.ne.s32.totalorder %s99, %s113
      %p115 = scmp.eq.s32.totalorder %s26, 0
      %p116 = por %p114, %p115
      %s118 = sadd.s32 %s117, 1
      %p121 = scmp.eq.s32.totalorder %s20, 1
      %p122 = scmp.ne.s32.totalorder %s117, %s119
      %p123 = scmp.eq.s32.totalorder %s20, 0
      %p124 = por %p122, %p123
      %p125 = scmp.ne.s32.totalorder %s117, %s119
      %p126 = scmp.eq.s32.totalorder %s25, 1
      %p127 = por %p125, %p126
      %p128 = scmp.ne.s32.totalorder %s119, %s120
      %p129 = scmp.eq.s32.totalorder %s25, 0
      %p130 = por %p128, %p129
      %p131 = scmp.ne.s32.totalorder %s119, %s120
      %p132 = scmp.eq.s32.totalorder %s26, 1
      %p133 = por %p131, %p132
      %p135 = scmp.ne.s32.totalorder %s120, %s134
      %p136 = scmp.eq.s32.totalorder %s26, 0
      %p137 = por %p135, %p136
      %s139 = sadd.s32 %s138, 1
      %p142 = scmp.eq.s32.totalorder %s20, 1
      %p143 = scmp.ne.s32.totalorder %s138, %s140
      %p144 = scmp.eq.s32.totalorder %s20, 0
      %p145 = por %p143, %p144
      %p146 = scmp.ne.s32.totalorder %s138, %s140
      %p147 = scmp.eq.s32.totalorder %s25, 1
      %p148 = por %p146, %p147
      %p149 = scmp.ne.s32.totalorder %s140, %s141
      %p150 = scmp.eq.s32.totalorder %s25, 0
      %p151 = por %p149, %p150
      %p152 = scmp.ne.s32.totalorder %s140, %s141
      %p153 = scmp.eq.s32.totalorder %s26, 1
      %p154 = por %p152, %p153
      %p156 = scmp.ne.s32.totalorder %s141, %s155
      %p157 = scmp.eq.s32.totalorder %s26, 0
      %p158 = por %p156, %p157
      %s160 = sadd.s32 %s159, 1
      %p163 = scmp.eq.s32.totalorder %s20, 1
      %p164 = scmp.ne.s32.totalorder %s159, %s161
      %p165 = scmp.eq.s32.totalorder %s20, 0
      %p166 = por %p164, %p165
      %p167 = scmp.ne.s32.totalorder %s159, %s161
      %p168 = scmp.eq.s32.totalorder %s25, 1
      %p169 = por %p167, %p168
      %p170 = scmp.ne.s32.totalorder %s161, %s162
      %p171 = scmp.eq.s32.totalorder %s25, 0
      %p172 = por %p170, %p171
      %p173 = scmp.ne.s32.totalorder %s161, %s162
      %p174 = scmp.eq.s32.totalorder %s26, 1
      %p175 = por %p173, %p174
      %p177 = scmp.ne.s32.totalorder %s162, %s176
      %p178 = scmp.eq.s32.totalorder %s26, 0
      %p179 = por %p177, %p178
      %s180 = ssub.s32 %s27, %s39
      %s181 = ssub.s32 %s28, %s35
      %s182 = sor.u32 %s180, %s181
      %p183 = scmp.eq.s32.totalorder %s182, 0
      %s185 = sadd.s32 %s184, 1
      %s186 = scalar_select %p183, %s184, %s185
      %p189 = pneg %p183
      %p190 = scmp.eq.s32.totalorder %s20, 1
      %p191 = por %p189, %p190
      %p192 = scmp.ne.s32.totalorder %s184, %s187
      %p193 = scmp.eq.s32.totalorder %s20, 0
      %p194 = por %p192, %p193
      %p195 = scmp.ne.s32.totalorder %s184, %s187
      %p196 = scmp.eq.s32.totalorder %s25, 1
      %p197 = por %p195, %p196
      %p198 = scmp.ne.s32.totalorder %s187, %s188
      %p199 = scmp.eq.s32.totalorder %s25, 0
      %p200 = por %p198, %p199
      %p201 = scmp.ne.s32.totalorder %s187, %s188
      %p202 = scmp.eq.s32.totalorder %s26, 1
      %p203 = por %p201, %p202
      %p205 = scmp.ne.s32.totalorder %s188, %s204
      %p206 = scmp.eq.s32.totalorder %s26, 0
      %p207 = por %p205, %p206
      %s208 = ssub.s32 %s27, %s39
      %s209 = ssub.s32 %s28, %s35
      %s210 = sor.u32 %s208, %s209
      %p211 = scmp.eq.s32.totalorder %s210, 0
      %s213 = sadd.s32 %s212, 1
      %s214 = scalar_select %p211, %s212, %s213
      %p217 = pneg %p211
      %p218 = scmp.eq.s32.totalorder %s20, 1
      %p219 = por %p217, %p218
      %p220 = scmp.ne.s32.totalorder %s212, %s215
      %p221 = scmp.eq.s32.totalorder %s20, 0
      %p222 = por %p220, %p221
      %p223 = scmp.ne.s32.totalorder %s212, %s215
      %p224 = scmp.eq.s32.totalorder %s25, 1
      %p225 = por %p223, %p224
      %p226 = scmp.ne.s32.totalorder %s215, %s216
      %p227 = scmp.eq.s32.totalorder %s25, 0
      %p228 = por %p226, %p227
      %p229 = scmp.ne.s32.totalorder %s215, %s216
      %p230 = scmp.eq.s32.totalorder %s26, 1
      %p231 = por %p229, %p230
      %p233 = scmp.ne.s32.totalorder %s216, %s232
      %p234 = scmp.eq.s32.totalorder %s26, 0
      %p235 = por %p233, %p234
      %p236 = scmp.le.s32.totalorder 1, %s20
      %p237 = scmp.lt.s32.totalorder %s20, 3
      %p238 = pnand %p236, %p237
      %p239 = pneg %p238
      // Predicated region
      $region9: #{tpu_custom_call.1} parent=5 // pred_check
        _
      $region10: #{tpu_custom_call.1} parent=5 // pred_check_branch
        %241 = sbr.rel (%p238) target = $region12
      $region11: #{tpu_custom_call.1} parent=5 // pred_region
        %s242 = ssub.s32 %s20, 1
        // Predicated region
        $region13: #{tpu_custom_call.1} parent=11 // pred_check
          %p243 = pneg %p109
        $region14: #{tpu_custom_call.1} parent=11 // pred_check_branch
          %245 = sbr.rel (%p243) target = $region16
        $region15: #{tpu_custom_call.1} parent=11 // pred_region
          _
        $region16: #{tpu_custom_call.1} parent=11 // pred_fallthru
          _
        // Predicated region
        $region17: #{tpu_custom_call.1} parent=11 // pred_check
          %p246 = pneg %p130
        $region18: #{tpu_custom_call.1} parent=11 // pred_check_branch
          %248 = sbr.rel (%p246) target = $region20
        $region19: #{tpu_custom_call.1} parent=11 // pred_region
          _
        $region20: #{tpu_custom_call.1} parent=11 // pred_fallthru
          _
        // Predicated region
        $region21: #{tpu_custom_call.1} parent=11 // pred_check
          %p249 = pneg %p151
        $region22: #{tpu_custom_call.1} parent=11 // pred_check_branch
          %251 = sbr.rel (%p249) target = $region24
        $region23: #{tpu_custom_call.1} parent=11 // pred_region
          _
        $region24: #{tpu_custom_call.1} parent=11 // pred_fallthru
          _
        // Predicated region
        $region25: #{tpu_custom_call.1} parent=11 // pred_check
          %p252 = pneg %p172
        $region26: #{tpu_custom_call.1} parent=11 // pred_check_branch
          %254 = sbr.rel (%p252) target = $region28
        $region27: #{tpu_custom_call.1} parent=11 // pred_region
          _
        $region28: #{tpu_custom_call.1} parent=11 // pred_fallthru
          _
      $region12: #{tpu_custom_call.1} parent=5 // pred_fallthru
        _
      %p255 = scmp.lt.s32.totalorder %s20, 2
      // Predicated region
      $region29: #{tpu_custom_call.1} parent=5 // pred_check
        %p256 = pneg %p255
      $region30: #{tpu_custom_call.1} parent=5 // pred_check_branch
        %258 = sbr.rel (%p256) target = $region32
      $region31: #{tpu_custom_call.1} parent=5 // pred_region
        // Predicated region
        $region33: #{tpu_custom_call.1} parent=31 // pred_check
          %p259 = pneg %p54
        $region34: #{tpu_custom_call.1} parent=31 // pred_check_branch
          %261 = sbr.rel (%p259) target = $region36
        $region35: #{tpu_custom_call.1} parent=31 // pred_region
          %p262 = scmp.lt.s32.totalorder %s27, 1
          %s263 = scalar_select %p262, %s27, 1
          %p264 = scmp.lt.s32.totalorder %s28, 0
          %s265 = scalar_select %p264, %s28, 0
          %s266 = smul.addr %s263, 4
          %s267 = sadd.s32 %s265, %s266
          %s268 = smul.addr %s267, 8
          %s269 = scalar_lea.vmem %s0, %s268
        $region36: #{tpu_custom_call.1} parent=31 // pred_fallthru
          _
        // Predicated region
        $region37: #{tpu_custom_call.1} parent=31 // pred_check
          %p270 = pneg %p82
        $region38: #{tpu_custom_call.1} parent=31 // pred_check_branch
          %272 = sbr.rel (%p270) target = $region40
        $region39: #{tpu_custom_call.1} parent=31 // pred_region
          %p273 = scmp.lt.s32.totalorder %s27, 1
          %s274 = scalar_select %p273, %s27, 1
          %p275 = scmp.lt.s32.totalorder %s28, 0
          %s276 = scalar_select %p275, %s28, 0
          %s277 = sadd.s32 %s276, %s274
          %s278 = smul.addr %s277, 4
          %s279 = scalar_lea.vmem %s1, %s278
        $region40: #{tpu_custom_call.1} parent=31 // pred_fallthru
          _
      $region32: #{tpu_custom_call.1} parent=5 // pred_fallthru
        _
      %p280 = scmp.le.s32.totalorder 1, %s20
      %p281 = scmp.lt.s32.totalorder %s20, 3
      %p282 = pnand %p280, %p281
      %p283 = pneg %p282
      // Predicated region
      $region41: #{tpu_custom_call.1} parent=5 // pred_check
        _
      $region42: #{tpu_custom_call.1} parent=5 // pred_check_branch
        %285 = sbr.rel (%p282) target = $region44
      $region43: #{tpu_custom_call.1} parent=5 // pred_region
        %s286 = ssub.s32 %s20, 1
        %p287 = scmp.lt.s32.totalorder %s29, 1
        %s288 = scalar_select %p287, %s29, 1
        %p289 = scmp.lt.s32.totalorder %s30, 0
        %s290 = scalar_select %p289, %s30, 0
        %s291 = smul.addr %s288, 4
        %s292 = sadd.s32 %s290, %s291
        %s293 = smul.addr %s292, 8
        %s294 = scalar_lea.vmem %s0, %s293
        %p295 = pneg %p60
        %p296 = pneg %p57
        %p297 = scmp.lt.s32.totalorder %s29, 1
        %s298 = scalar_select %p297, %s29, 1
        %p299 = scmp.lt.s32.totalorder %s30, 0
        %s300 = scalar_select %p299, %s30, 0
        %s301 = sadd.s32 %s300, %s298
        %s302 = smul.addr %s301, 4
        %s303 = scalar_lea.vmem %s1, %s302
        %p304 = pneg %p88
        %p305 = pneg %p85
        %p306 = pneg %p109
        %p307 = pneg %p106
        %p308 = pneg %p130
        %p309 = pneg %p127
        %p310 = pneg %p151
        %p311 = pneg %p148
        %p312 = pneg %p172
        %p313 = pneg %p169
        %p314 = pneg %p200
        %p315 = pneg %p197
        %s316 = sand.u32 %s187, 1
        %s317 = scalar_lea.sflag [#allocation3], %s316
        %s318 = sand.u32 %s187, 1
        %s319 = smul.addr %s318, 32
        %s320 = scalar_lea.vmem [#allocation2], %s319
        %p321 = pneg %p228
        %p322 = pneg %p225
        %s323 = sand.u32 %s215, 1
        %s324 = scalar_lea.sflag [#allocation5], %s323
        %s325 = sand.u32 %s215, 1
        %s326 = smul.addr %s325, 16
        %s327 = scalar_lea.vmem [#allocation4], %s326
        %p328 = scmp.lt.s32.totalorder %s29, 1
        %s329 = scalar_select %p328, %s29, 1
        %p330 = scmp.lt.s32.totalorder %s30, 0
        %s331 = scalar_select %p330, %s30, 0
        %s332 = smul.addr %s329, 4
        %s333 = sadd.s32 %s331, %s332
        %s334 = smul.addr %s333, 8
        %s335 = scalar_lea.vmem %s0, %s334
        %p336 = scmp.lt.s32.totalorder %s29, 1
        %s337 = scalar_select %p336, %s29, 1
        %p338 = scmp.lt.s32.totalorder %s30, 0
        %s339 = scalar_select %p338, %s30, 0
        %s340 = sadd.s32 %s339, %s337
        %s341 = smul.addr %s340, 4
        %s342 = scalar_lea.vmem %s1, %s341
        %v344 = vld [vmem:[%s335] sm:$0xff]
        %v345 = vld [vmem:[%s335 + $0x8] sm:$0xff]
        %v346 = vld [vmem:[%s335 + $0x10] sm:$0xff]
        %v347 = vld [vmem:[%s335 + $0x18] sm:$0xff]
        %v348 = vld [vmem:[%s2] sm:$0xff]
        %v349 = vld [vmem:[%s2 + $0x8] sm:$0xff]
        %v350 = vld [vmem:[%s2 + $0x10] sm:$0xff]
        %v351 = vld [vmem:[%s2 + $0x18] sm:$0xff]
        %353 = vset.pattern.permute.xlu0 0
        %354 = vperm.xlu0 %353, %v348
        %v355 = vpop.permute.xlu0 %354
        %358 = vset.pattern.permute.xlu0 0
        %359 = vperm.xlu0 %358, %v349
        %v360 = vpop.permute.xlu0 %359
        %363 = vset.pattern.permute.xlu0 0
        %364 = vperm.xlu0 %363, %v350
        %v365 = vpop.permute.xlu0 %364
        %368 = vset.pattern.permute.xlu0 0
        %369 = vperm.xlu0 %368, %v351
        %v370 = vpop.permute.xlu0 %369
        %v372 = vmul.f32 %v344, %v355
        %v373 = vmul.f32 %v345, %v360
        %v374 = vmul.f32 %v346, %v365
        %v375 = vmul.f32 %v347, %v370
        %v376 = vld [vmem:[%s3] sm:$0xff]
        %v377 = vld [vmem:[%s3 + $0x8] sm:$0xff]
        %v378 = vld [vmem:[%s3 + $0x10] sm:$0xff]
        %v379 = vld [vmem:[%s3 + $0x18] sm:$0xff]
        %381 = vset.pattern.permute.xlu0 0
        %382 = vperm.xlu0 %381, %v376
        %v383 = vpop.permute.xlu0 %382
        %386 = vset.pattern.permute.xlu0 0
        %387 = vperm.xlu0 %386, %v377
        %v388 = vpop.permute.xlu0 %387
        %391 = vset.pattern.permute.xlu0 0
        %392 = vperm.xlu0 %391, %v378
        %v393 = vpop.permute.xlu0 %392
        %396 = vset.pattern.permute.xlu0 0
        %397 = vperm.xlu0 %396, %v379
        %v398 = vpop.permute.xlu0 %397
        %v400 = vadd.f32 %v372, %v383
        %v401 = vadd.f32 %v373, %v388
        %v402 = vadd.f32 %v374, %v393
        %v403 = vadd.f32 %v375, %v398
        %vm404 = vcmask 523264
        %405 = vst.msk [vmem:[%s320] sm:$0xff] %vm404, %v400
        %406 = vst.msk [vmem:[%s320 + $0x8] sm:$0xff] %vm404, %v401
        %407 = vst.msk [vmem:[%s320 + $0x10] sm:$0xff] %vm404, %v402
        %408 = vst.msk [vmem:[%s320 + $0x18] sm:$0xff] %vm404, %v403
        %v409 = vld [vmem:[%s4] sm:$0xf]
        %v410 = vld [vmem:[%s4 + $0x4] sm:$0xf]
        %v411 = vpack.c.bf16 %v401, %v400
        %v412 = vpack.c.bf16 %v403, %v402
        %v413 = vld [vmem:[%s5] sm:$0xf]
        %v414 = vld [vmem:[%s5 + $0x4] sm:$0xf]
        %v415 = vld [vmem:[%s342] sm:$0x7]
        %v416 = vpack.c.bf16 %v415, %v415
        %v419 = vunpack.c.l.b16 %v413
        %v420 = vunpack.c.l.b16 %v414
        %v421 = vpack.c.b16 %v420, %v419
        %vm422 = vcmask 23552
        %v424 = vsel %vm422, %v421, 0
        %vm426 = vcmask 1040384
        %vm427 = vcmask 1041408
        %v428 = vsel %vm426, 4294967295, 65535
        %v429 = vsel %vm427, %v428, 0
        %v431 = vand.u32 %v416, %v429
        %433 = vmatprep.subr.bf16.mxu0 0
        %434 = vmatpush1.bf16.msra.mxu0 0
        %435 = vmatprep.subr.bf16.mxu0 0
        %436 = vmatpush1.bf16.msra.mxu0 0
        %437 = vmatprep.subr.bf16.mxu0 0
        %438 = vmatpush1.bf16.msra.mxu0 0
        %439 = vmatprep.subr.bf16.mxu0 0
        %440 = vmatpush1.bf16.msra.mxu0 0
        %441 = vmatprep.subr.bf16.mxu0 0
        %442 = vmatpush1.bf16.msra.mxu0 0
        %443 = vmatprep.subr.bf16.mxu0 0
        %444 = vmatpush1.bf16.msra.mxu0 0
        %445 = vmatprep.subr.bf16.mxu0 0
        %446 = vmatpush1.bf16.msra.mxu0 0
        %447 = vmatprep.subr.bf16.mxu0 0
        %448 = vmatpush1.bf16.msra.mxu0 %v431
        %449 = vmatprep.subr.bf16.mxu0 0
        %450 = vmatpush2.bf16.msra.mxu0 0
        %451 = vmatprep.subr.bf16.mxu0 0
        %452 = vmatpush2.bf16.msra.mxu0 0
        %453 = vmatprep.subr.bf16.mxu0 0
        %454 = vmatpush2.bf16.msra.mxu0 0
        %455 = vmatprep.subr.bf16.mxu0 0
        %456 = vmatpush2.bf16.msra.mxu0 0
        %457 = vmatprep.subr.bf16.mxu0 0
        %458 = vmatpush2.bf16.msra.mxu0 0
        %459 = vmatprep.subr.bf16.mxu0 0
        %460 = vmatpush2.bf16.msra.mxu0 0
        %461 = vmatprep.subr.bf16.mxu0 0
        %462 = vmatpush2.bf16.msra.mxu0 0
        %463 = vmatprep.subr.bf16.mxu0 0
        %464 = vmatpush2.bf16.msra.mxu0 0
        %465 = vmatprep.mubr.bf16.mxu0 0
        %466 = vmatmul.mubr.bf16.gmra.mxu0 %v424
        %v467 = vpop.f32.mrf.mxu0
        %v468 = vadd.f32 0.0, %v467
        %v469 = vpop.f32.mrf.mxu0
        %v470 = vpop.f32.mrf.mxu0
        %v471 = vadd.f32 0.0, %v470
        %v472 = vpop.f32.mrf.mxu0
        %473 = vdwg.mxu0
        %v476 = vunpack.c.l.b16 %v409
        %v477 = vunpack.c.l.b16 %v410
        %v478 = vpack.c.b16 %v477, %v476
        %vm479 = vcmask 261120
        %v481 = vsel %vm479, %v478, 0
        %483 = vmatprep.subr.bf16.mxu0 0
        %484 = vmatpush1.bf16.msra.mxu0 0
        %485 = vmatprep.subr.bf16.mxu0 0
        %486 = vmatpush1.bf16.msra.mxu0 0
        %487 = vmatprep.subr.bf16.mxu0 0
        %488 = vmatpush1.bf16.msra.mxu0 0
        %489 = vmatprep.subr.bf16.mxu0 0
        %490 = vmatpush1.bf16.msra.mxu0 0
        %491 = vmatprep.subr.bf16.mxu0 0
        %492 = vmatpush1.bf16.msra.mxu0 0
        %493 = vmatprep.subr.bf16.mxu0 0
        %494 = vmatpush1.bf16.msra.mxu0 0
        %495 = vmatprep.subr.bf16.mxu0 0
        %496 = vmatpush1.bf16.msra.mxu0 %v412
        %497 = vmatprep.subr.bf16.mxu0 0
        %498 = vmatpush1.bf16.msra.mxu0 %v411
        %499 = vmatprep.subr.bf16.mxu0 0
        %500 = vmatpush2.bf16.msra.mxu0 0
        %501 = vmatprep.subr.bf16.mxu0 0
        %502 = vmatpush2.bf16.msra.mxu0 0
        %503 = vmatprep.subr.bf16.mxu0 0
        %504 = vmatpush2.bf16.msra.mxu0 0
        %505 = vmatprep.subr.bf16.mxu0 0
        %506 = vmatpush2.bf16.msra.mxu0 0
        %507 = vmatprep.subr.bf16.mxu0 0
        %508 = vmatpush2.bf16.msra.mxu0 0
        %509 = vmatprep.subr.bf16.mxu0 0
        %510 = vmatpush2.bf16.msra.mxu0 0
        %511 = vmatprep.subr.bf16.mxu0 0
        %512 = vmatpush2.bf16.msra.mxu0 0
        %513 = vmatprep.subr.bf16.mxu0 0
        %514 = vmatpush2.bf16.msra.mxu0 0
        %515 = vmatprep.mubr.bf16.mxu0 0
        %516 = vmatmul.mubr.bf16.gmra.mxu0 %v481
        %v517 = vpop.f32.mrf.mxu0
        %v518 = vadd.f32 %v468, %v517
        %v519 = vpop.f32.mrf.mxu0
        %v520 = vpop.f32.mrf.mxu0
        %v521 = vadd.f32 %v471, %v520
        %v522 = vpop.f32.mrf.mxu0
        %523 = vdwg.mxu0
        %524 = vst.msk [vmem:[%s327] sm:$0xff] %vm404, %v518
        %525 = vst.msk [vmem:[%s327 + $0x8] sm:$0xff] %vm404, %v521
        %s526 = sand.u32 %s187, 1
        %s527 = scalar_lea.sflag [#allocation3], %s526
        %s528 = sand.u32 %s187, 1
        %s529 = smul.addr %s528, 32
        %s530 = scalar_lea.vmem [#allocation2], %s529
        %s531 = sand.u32 %s215, 1
        %s532 = scalar_lea.sflag [#allocation5], %s531
        %s533 = sand.u32 %s215, 1
        %s534 = smul.addr %s533, 16
        %s535 = scalar_lea.vmem [#allocation4], %s534
        // Predicated region
        $region45: #{tpu_custom_call.1} parent=43 // pred_check
          %p536 = pneg %p197
        $region46: #{tpu_custom_call.1} parent=43 // pred_check_branch
          %538 = sbr.rel (%p536) target = $region48
        $region47: #{tpu_custom_call.1} parent=43 // pred_region
          %s540 = ssub.s32 512, 512
          %541 = vsyncadd %s527, %s540
          %s542 = smul.addr %s29, 4
          %s543 = sadd.s32 %s30, %s542
          %s544 = smul.addr %s543, 128
          %s545 = scalar_lea.hbm %s6, %s544
          %s546 = sshll.u32 %s530, 4
          %s547 = int_to_ptr.vmem [resolvable:$true] %s546
          %552 = dma.vmem_to_hbm [thread:$0]  %s547, 512, %s545, %s527, 128, 128, 8
        $region48: #{tpu_custom_call.1} parent=43 // pred_fallthru
          _
        // Predicated region
        $region49: #{tpu_custom_call.1} parent=43 // pred_check
          %p553 = pneg %p225
        $region50: #{tpu_custom_call.1} parent=43 // pred_check_branch
          %555 = sbr.rel (%p553) target = $region52
        $region51: #{tpu_custom_call.1} parent=43 // pred_region
          %s557 = ssub.s32 256, 256
          %558 = vsyncadd %s532, %s557
          %s559 = smul.addr %s29, 2
          %s560 = sadd.s32 %s30, %s559
          %s561 = smul.addr %s560, 128
          %s562 = scalar_lea.hbm %s7, %s561
          %s563 = sshll.u32 %s535, 4
          %s564 = int_to_ptr.vmem [resolvable:$true] %s563
          %569 = dma.vmem_to_hbm [thread:$0]  %s564, 256, %s562, %s532, 128, 128, 8
        $region52: #{tpu_custom_call.1} parent=43 // pred_fallthru
          _
      $region44: #{tpu_custom_call.1} parent=5 // pred_fallthru
        _
      %p570 = scmp.le.s32.totalorder 2, %s20
      // Predicated region
      $region53: #{tpu_custom_call.1} parent=5 // pred_check
        %p571 = pneg %p570
      $region54: #{tpu_custom_call.1} parent=5 // pred_check_branch
        %573 = sbr.rel (%p571) target = $region56
      $region55: #{tpu_custom_call.1} parent=5 // pred_region
        %s574 = ssub.s32 %s20, 2
        // Predicated region
        $region57: #{tpu_custom_call.1} parent=55 // pred_check
          %p575 = pneg %p203
        $region58: #{tpu_custom_call.1} parent=55 // pred_check_branch
          %577 = sbr.rel (%p575) target = $region60
        $region59: #{tpu_custom_call.1} parent=55 // pred_region
          %s578 = sand.u32 %s188, 1
          %s579 = scalar_lea.sflag [#allocation3], %s578
          %s580 = sand.u32 %s188, 1
          %s581 = smul.addr %s580, 32
          %s582 = scalar_lea.vmem [#allocation2], %s581
          %583 = dma.done %s579, 512
        $region60: #{tpu_custom_call.1} parent=55 // pred_fallthru
          _
        // Predicated region
        $region61: #{tpu_custom_call.1} parent=55 // pred_check
          %p584 = pneg %p231
        $region62: #{tpu_custom_call.1} parent=55 // pred_check_branch
          %586 = sbr.rel (%p584) target = $region64
        $region63: #{tpu_custom_call.1} parent=55 // pred_region
          %s587 = sand.u32 %s216, 1
          %s588 = scalar_lea.sflag [#allocation5], %s587
          %s589 = sand.u32 %s216, 1
          %s590 = smul.addr %s589, 16
          %s591 = scalar_lea.vmem [#allocation4], %s590
          %592 = dma.done %s588, 256
        $region64: #{tpu_custom_call.1} parent=55 // pred_fallthru
          _
      $region56: #{tpu_custom_call.1} parent=5 // pred_fallthru
        _
    $region6: #{tpu_custom_call.1} parent=1 // loop_footer
      %s24 = sadd.s32 1, %s20
    $region7: #{tpu_custom_call.1} parent=1 // loop_footer_branch
      %19 = sbr.rel target = $region3
    $region8: #{tpu_custom_call.1} parent=1 // loop_exit
      _
    %593 = vsyncpa [#allocation3], 1
    %s594 = scalar_lea.sflag [#allocation3], 1
    %595 = vsyncpa %s594, 1
    %596 = vsyncpa [#allocation5], 1
    %s597 = scalar_lea.sflag [#allocation5], 1
    %598 = vsyncpa %s597, 1

</llo_original>
